<compile_context>
chip_gen: v6e
topology: v6e:2x2x1
jax: 0.10.0
libtpu: 0.0.40
codegen_flags: <defaults>
</compile_context>

<pallas_src>
import jax
import jax.numpy as jnp
from jax.experimental import pallas as pl
from jax.experimental.pallas import tpu as pltpu


def _planar_flow_kernel(scalars_ref, z_ref, params_ref, x_ref, logdet_ref):
    # scalars_ref : (2,) f32 in SMEM -> [b, psi]
    # z_ref, x_ref: (TM, D) VMEM tiles
    # params_ref  : (2, D) f32 VMEM  -> row 0 = u_c^T, row 1 = w^T
    # logdet_ref  : (1, TM) lane-dense output tile (log_det transposed)
    b = scalars_ref[0]
    psi = scalars_ref[1]

    zf = z_ref[...].astype(jnp.float32)                       # (TM, D)
    uc = params_ref[0:1, :]                                    # (1, D)
    w = params_ref[1:2, :]                                     # (1, D)

    # hidden = z @ w + b : VPU multiply + XLU lane-reduce (MXU would be idle
    # with N=1 and small K).
    hidden = jnp.sum(zf * w, axis=-1, keepdims=True) + b       # (TM, 1) f32
    t = jnp.tanh(hidden)                                       # EUP

    # x = z + u_c^T * tanh(hidden)
    x_ref[...] = (zf + uc * t).astype(x_ref.dtype)             # (TM, D)

    # log_det = log(|1 + psi * (1 - tanh^2)| + 1e-15), stored lane-dense.
    h_prime = 1.0 - t * t
    ld = jnp.log(jnp.abs(1.0 + psi * h_prime) + 1e-15)         # (TM, 1)
    logdet_ref[...] = jnp.transpose(ld, (1, 0))                # (1, TM), XLU


def tanh_planar_flow(z, u, w, b, *, block_m=None):
    """z: (m, data_dim); u, w: (data_dim, 1); b: (1,). Returns (x, log_det)."""
    m, data_dim = z.shape

    # --- tiny parameter glue (scalar math, plain JAX) ---
    u32 = u.astype(jnp.float32)
    w32 = w.astype(jnp.float32)
    wu = w32.T @ u32                                           # (1, 1)
    m_fn = -1.0 + jax.nn.softplus(wu)                          # stable softplus - 1
    w_norm_sq = jnp.sum(w32 * w32)
    u_c = u32 + (m_fn - wu) * (w32 / (w_norm_sq + 1e-15))      # (data_dim, 1)
    psi = u_c.T @ w32                                          # (1, 1)

    scalars = jnp.concatenate(
        [jnp.reshape(b, (1,)), jnp.reshape(psi, (1,))]).astype(jnp.float32)  # (2,)
    params = jnp.concatenate([u_c.T, w32.T], axis=0)           # (2, data_dim) f32

    # Row tile: full extent if the batch is small, otherwise a multiple of 128
    # (keeps the (TM, D) sublane dim /8 and the (1, TM) lane dim /128 legal)
    # sized so a z tile is ~2 MiB (well under scoped VMEM after double
    # buffering in + both outputs).
    itemsize = jnp.dtype(z.dtype).itemsize
    tile_budget_bytes = 2 * 1024 * 1024
    rows = max(128, (tile_budget_bytes // (data_dim * itemsize) // 128) * 128)
    if block_m is not None:
        rows = min(rows, max(128, (block_m // 128) * 128))
    tm = m if m <= rows else rows
    grid = (pl.cdiv(m, tm),)

    x, log_det_row = pl.pallas_call(
        _planar_flow_kernel,
        grid=grid,
        out_shape=(
            jax.ShapeDtypeStruct((m, data_dim), z.dtype),
            jax.ShapeDtypeStruct((1, m), jnp.float32),
        ),
        in_specs=[
            pl.BlockSpec(memory_space=pltpu.SMEM),             # [b, psi]
            pl.BlockSpec((tm, data_dim), lambda i: (i, 0)),    # z tile
            pl.BlockSpec((2, data_dim), lambda i: (0, 0)),     # [u_c^T; w^T]
        ],
        out_specs=(
            pl.BlockSpec((tm, data_dim), lambda i: (i, 0)),    # x tile
            pl.BlockSpec((1, tm), lambda i: (0, i)),           # log_det (lane-dense)
        ),
        compiler_params=pltpu.CompilerParams(
            dimension_semantics=("parallel",)),
    )(scalars, z, params)

    return x, log_det_row.reshape(m, 1)


def _reference(z, u, w, b):
    wu = w.T @ u
    m_fn = -1.0 + jax.nn.softplus(wu)
    u_c = u + (m_fn - wu) * (w / (jnp.sum(w * w) + 1e-15))
    hidden = z @ w + b
    x = z + u_c.T * jnp.tanh(hidden)
    psi = u_c.T @ w
    log_det = jnp.log(jnp.abs(1.0 + psi * (1.0 - jnp.tanh(hidden) ** 2)) + 1e-15)
    return x, log_det


if __name__ == "__main__":
    key = jax.random.PRNGKey(0)
    k_z, k_u, k_w, k_b, k_z2 = jax.random.split(key, 5)

    batch, data_dim = 8, 32
    z = jax.random.normal(k_z, (batch, data_dim), dtype=jnp.float32)
    # torch.rand ~ U[0, 1)
    u = jax.random.uniform(k_u, (data_dim, 1), dtype=jnp.float32)
    w = jax.random.uniform(k_w, (data_dim, 1), dtype=jnp.float32)
    b = jax.random.uniform(k_b, (1,), dtype=jnp.float32)

    # Small, single-tile case.
    x, log_det = tanh_planar_flow(z, u, w, b)
    jax.block_until_ready((x, log_det))
    x_ref, ld_ref = _reference(z, u, w, b)
    assert x.shape == (batch, data_dim) and log_det.shape == (batch, 1)
    assert jnp.allclose(x, x_ref, atol=1e-5, rtol=1e-5)
    assert jnp.allclose(log_det, ld_ref, atol=1e-5, rtol=1e-5)

    # Larger case that exercises the tiled / pipelined grid path (multiple
    # grid steps, including a partial final tile).
    big_batch = 1000
    z2 = jax.random.normal(k_z2, (big_batch, data_dim), dtype=jnp.float32)
    x2, log_det2 = tanh_planar_flow(z2, u, w, b, block_m=256)
    jax.block_until_ready((x2, log_det2))
    x2_ref, ld2_ref = _reference(z2, u, w, b)
    assert jnp.allclose(x2, x2_ref, atol=1e-5, rtol=1e-5)
    assert jnp.allclose(log_det2, ld2_ref, atol=1e-5, rtol=1e-5)

    print("KERNEL_OK")
</pallas_src>

<mosaic_0001>
module attributes {stable_mosaic.version = 11 : i64} {
  func.func @_planar_flow_kernel(%arg0: i32, %arg1: memref<2xf32, #tpu.memory_space<smem>>, %arg2: memref<8x32xf32, #tpu.memory_space<vmem>>, %arg3: memref<2x32xf32, #tpu.memory_space<vmem>>, %arg4: memref<8x32xf32, #tpu.memory_space<vmem>>, %arg5: memref<1x8xf32, #tpu.memory_space<vmem>>) attributes {dimension_semantics = [#tpu.dimension_semantics<parallel>], iteration_bounds = array<i64: 1>, scalar_prefetch = 0 : i64, scratch_operands = 0 : i64, tpu.core_type = #tpu.core_type<tc>, window_params = [{transform_indices = @transform_0, window_bounds = array<i64: 2>}, {transform_indices = @transform_1, window_bounds = array<i64: 8, 32>}, {pipeline_mode = #tpu.pipeline_mode<synchronous>, transform_indices = @transform_2, window_bounds = array<i64: 2, 32>}, {transform_indices = @transform_3, window_bounds = array<i64: 8, 32>}, {transform_indices = @transform_4, window_bounds = array<i64: 1, 8>}]} {
    %c0 = arith.constant 0 : index
    %0 = memref.load %arg1[%c0] : memref<2xf32, #tpu.memory_space<smem>>
    %c1 = arith.constant 1 : index
    %1 = memref.load %arg1[%c1] : memref<2xf32, #tpu.memory_space<smem>>
    %c0_0 = arith.constant 0 : index
    %c0_1 = arith.constant 0 : index
    %2 = vector.load %arg2[%c0_0, %c0_1] : memref<8x32xf32, #tpu.memory_space<vmem>>, vector<8x32xf32>
    %c0_2 = arith.constant 0 : index
    %c0_3 = arith.constant 0 : index
    %3 = vector.load %arg3[%c0_2, %c0_3] : memref<2x32xf32, #tpu.memory_space<vmem>>, vector<1x32xf32>
    %c1_4 = arith.constant 1 : index
    %c0_5 = arith.constant 0 : index
    %4 = vector.load %arg3[%c1_4, %c0_5] : memref<2x32xf32, #tpu.memory_space<vmem>>, vector<1x32xf32>
    %5 = vector.broadcast %4 : vector<1x32xf32> to vector<8x32xf32>
    %6 = arith.mulf %2, %5 : vector<8x32xf32>
    %cst = arith.constant dense<0.000000e+00> : vector<8xf32>
    %7 = vector.multi_reduction <add>, %6, %cst [1] : vector<8x32xf32> to vector<8xf32>
    %8 = vector.shape_cast %7 : vector<8xf32> to vector<8x1xf32>
    %9 = vector.broadcast %0 : f32 to vector<8x1xf32>
    %10 = arith.addf %8, %9 : vector<8x1xf32>
    %11 = math.tanh %10 : vector<8x1xf32>
    %12 = vector.broadcast %3 : vector<1x32xf32> to vector<8x32xf32>
    %13 = vector.broadcast %11 : vector<8x1xf32> to vector<8x32xf32>
    %14 = arith.mulf %12, %13 : vector<8x32xf32>
    %15 = arith.addf %2, %14 : vector<8x32xf32>
    %c0_6 = arith.constant 0 : index
    %c0_7 = arith.constant 0 : index
    %16 = vector.load %arg4[%c0_6, %c0_7] : memref<8x32xf32, #tpu.memory_space<vmem>>, vector<8x32xf32>
    tpu.vector_store %arg4[%c0_6, %c0_7], %15 {strides = array<i32>} : memref<8x32xf32, #tpu.memory_space<vmem>>, vector<8x32xf32>,
    %17 = arith.mulf %11, %11 : vector<8x1xf32>
    %cst_8 = arith.constant 1.000000e+00 : f32
    %18 = vector.broadcast %cst_8 : f32 to vector<8x1xf32>
    %19 = arith.subf %18, %17 : vector<8x1xf32>
    %20 = vector.broadcast %1 : f32 to vector<8x1xf32>
    %21 = arith.mulf %20, %19 : vector<8x1xf32>
    %cst_9 = arith.constant 1.000000e+00 : f32
    %22 = vector.broadcast %cst_9 : f32 to vector<8x1xf32>
    %23 = arith.addf %22, %21 : vector<8x1xf32>
    %24 = math.absf %23 : vector<8x1xf32>
    %cst_10 = arith.constant 1.000000e-15 : f32
    %25 = vector.broadcast %cst_10 : f32 to vector<8x1xf32>
    %26 = arith.addf %24, %25 : vector<8x1xf32>
    %27 = math.log %26 : vector<8x1xf32>
    %28 = tpu.transpose %27, [1, 0] : vector<8x1xf32> -> vector<1x8xf32>
    %c0_11 = arith.constant 0 : index
    %c0_12 = arith.constant 0 : index
    %29 = vector.load %arg5[%c0_11, %c0_12] : memref<1x8xf32, #tpu.memory_space<vmem>>, vector<1x8xf32>
    tpu.vector_store %arg5[%c0_11, %c0_12], %28 {strides = array<i32>} : memref<1x8xf32, #tpu.memory_space<vmem>>, vector<1x8xf32>,
    return
  }
  func.func @transform_0(%arg0: i32) -> i32 {
    %c0_i32 = arith.constant 0 : i32
    %c0_i32_0 = arith.constant 0 : i32
    return %c0_i32 : i32
  }
  func.func @transform_1(%arg0: i32) -> (i32, i32) {
    %c0_i32 = arith.constant 0 : i32
    %c0_i32_0 = arith.constant 0 : i32
    return %arg0, %c0_i32 : i32, i32
  }
  func.func @transform_2(%arg0: i32) -> (i32, i32) {
    %c0_i32 = arith.constant 0 : i32
    %c0_i32_0 = arith.constant 0 : i32
    %c0_i32_1 = arith.constant 0 : i32
    return %c0_i32, %c0_i32_0 : i32, i32
  }
  func.func @transform_3(%arg0: i32) -> (i32, i32) {
    %c0_i32 = arith.constant 0 : i32
    %c0_i32_0 = arith.constant 0 : i32
    return %arg0, %c0_i32 : i32, i32
  }
  func.func @transform_4(%arg0: i32) -> (i32, i32) {
    %c0_i32 = arith.constant 0 : i32
    %c0_i32_0 = arith.constant 0 : i32
    return %c0_i32, %arg0 : i32, i32
  }
}

</mosaic_0001>

<llo_original>
// kernel: tpu_custom_call.1
$region0: #{tpu_custom_call.1}
  #allocation0 [shape = 'u32[]', space=smem, size = 0x4, offset = 0x4, fixed_abs, tag = 'smem constant byte address 0x4 - core index']
  #allocation1 [shape = 'u32[144,128]{1,0:T(1,128)}', space=vmem, size = 0x12000, scoped, tag = 'internal scratch']
  %s0 = inlined_call_operand.hbm [shape: f32[2], index: 0, kind: input, shape index: {}]
  %s1 = inlined_call_operand.hbm [shape: f32[8,32], index: 1, kind: input, shape index: {}]
  %s2 = inlined_call_operand.vmem [shape: f32[2,32], index: 2, kind: input, shape index: {}]
  %s3 = inlined_call_operand.hbm [shape: f32[8,32], index: 3, kind: output, shape index: {0}]
  %s4 = inlined_call_operand.hbm [shape: f32[1,8], index: 4, kind: output, shape index: {1}]
  %5 = xla_tuple %s3, %s4
  %s6 = sld [smem:[#allocation0]]
  $region38: #{tpu_custom_call.1} parent=0
    _
  %s8 = ssub.s32 1, %s6
  %s9 = scalar_select 0, %s8, %s6
  $region1: #{tpu_custom_call.1} parent=0
    #allocation2 [shape = 'u8[512]{0}', space=smem, size = 0x200, scoped, tag = 'input window, operand 0, single buffered']
    #allocation3 [shape = 's32[1]{0}', space=sflag, size = 0x4, scoped, tag = 'scoped memory for tpu_custom_call.1']
    #allocation4 [shape = 's32[1]{0}', space=sflag, size = 0x4, scoped, tag = 'scoped memory for tpu_custom_call.1']
    #allocation5 [shape = 's32[1]{0}', space=sflag, size = 0x4, scoped, tag = 'scoped memory for tpu_custom_call.1']
    #allocation6 [shape = 'u8[4096]{0}', space=vmem, size = 0x1000, scoped, tag = 'input window, operand 1, single buffered']
    #allocation7 [shape = 'u8[4096]{0}', space=vmem, size = 0x1000, scoped, tag = 'output window, operand 0, single buffered']
    #allocation8 [shape = 'u8[512]{0}', space=vmem, size = 0x400, scoped, tag = 'output window, operand 1, single buffered']
    #allocation9 [shape = 's32[1]{0}', space=sflag, size = 0x4, scoped, tag = 'scoped memory for tpu_custom_call.1']
    %10 = vsyncpa [#allocation5], 0
    %11 = vsyncpa [#allocation3], 0
    %12 = vsyncpa [#allocation4], 0
    %13 = vsyncpa [#allocation9], 0
    // Predicated region
    $region2: #{tpu_custom_call.1} parent=1 // pred_check
      _
    $region3: #{tpu_custom_call.1} parent=1 // pred_check_branch
      %15 = sbr.rel (0) target = $region5
    $region4: #{tpu_custom_call.1} parent=1 // pred_region
      %s17 = ssub.s32 16, 16
      %18 = vsyncadd [#allocation5], %s17
      %21 = dma.hbm_to_smem %s0, 16, [#allocation2], [#allocation5]
    $region5: #{tpu_custom_call.1} parent=1 // pred_fallthru
      _
    // Predicated region
    $region6: #{tpu_custom_call.1} parent=1 // pred_check
      _
    $region7: #{tpu_custom_call.1} parent=1 // pred_check_branch
      %23 = sbr.rel (0) target = $region9
    $region8: #{tpu_custom_call.1} parent=1 // pred_region
      %s25 = ssub.s32 128, 128
      %26 = vsyncadd [#allocation3], %s25
      %s28 = sshll.u32 [#allocation6], 4
      %s29 = int_to_ptr.vmem [resolvable:$true] %s28
      %31 = dma.hbm_to_vmem [thread:$0]  %s1, 128, %s29, [#allocation3]
    $region9: #{tpu_custom_call.1} parent=1 // pred_fallthru
      _
    // Predicated region
    $region10: #{tpu_custom_call.1} parent=1 // pred_check
      _
    $region11: #{tpu_custom_call.1} parent=1 // pred_check_branch
      %33 = sbr.rel (0) target = $region13
    $region12: #{tpu_custom_call.1} parent=1 // pred_region
      _
    $region13: #{tpu_custom_call.1} parent=1 // pred_fallthru
      _
    // Predicated region
    $region14: #{tpu_custom_call.1} parent=1 // pred_check
      _
    $region15: #{tpu_custom_call.1} parent=1 // pred_check_branch
      %35 = sbr.rel (0) target = $region17
    $region16: #{tpu_custom_call.1} parent=1 // pred_region
      %36 = dma.done [#allocation5], 16
    $region17: #{tpu_custom_call.1} parent=1 // pred_fallthru
      _
    // Predicated region
    $region18: #{tpu_custom_call.1} parent=1 // pred_check
      _
    $region19: #{tpu_custom_call.1} parent=1 // pred_check_branch
      %38 = sbr.rel (0) target = $region21
    $region20: #{tpu_custom_call.1} parent=1 // pred_region
      %39 = dma.done [#allocation3], 128
    $region21: #{tpu_custom_call.1} parent=1 // pred_fallthru
      _
    %40 = sfence
    %s41 = sld [smem:[#allocation2]]
    %s42 = sld [smem:[#allocation2 + $0x1]]
    %v43 = vld [vmem:[#allocation6] sm:$0xff]
    %v44 = vld [vmem:[%s2] sm:$0x1]
    %v45 = vld [vmem:[%s2 + $0x1] sm:$0x1]
    %v46 = vlaneseq
    %v47 = vshrl.u32 %v46, 7
    %v48 = vsub.s32 0, %v47
    %v49 = vrot.slane %v45, %v48
    %v50 = vmul.f32 %v43, %v49
    %vm51 = vcmask 261120
    %v52 = vsel %vm51, %v50, 0.0
    %53 = vadd.xlane.f32.xlu0 %v52
    %v54 = vpop.xlane.xlu0 %53
    %v55 = vstv %s41
    %v56 = vadd.f32 %v54, %v55
    %v57 = vtanh.pop %v56
    %v58 = vlaneseq
    %v59 = vshrl.u32 %v58, 7
    %v60 = vsub.s32 0, %v59
    %v61 = vrot.slane %v44, %v60
    %v62 = vmul.f32 %v61, %v57
    %v63 = vadd.f32 %v43, %v62
    %64 = vst.msk [vmem:[#allocation7] sm:$0xff] %vm51, %v63
    %v65 = vmul.f32 %v57, %v57
    %v66 = vsub.f32 1.0, %v65
    %v67 = vstv %s42
    %v68 = vmul.f32 %v67, %v66
    %v69 = vadd.f32 %v68, 1.0
    %v70 = vand.u32 2147483647, %v69
    %v71 = vadd.f32 %v70, 1e-15
    %v72 = vlog2.pop %v71
    %v73 = vmul.f32 %v72, 0.6931472
    %74 = vxpose.xlu0.b32.start [1/16] %v73, 128
    %75 = vxpose.xlu0.b32.cont [2/16] 0.0, 128
    %76 = vxpose.xlu0.b32.cont [3/16] 0.0, 128
    %77 = vxpose.xlu0.b32.cont [4/16] 0.0, 128
    %78 = vxpose.xlu0.b32.cont [5/16] 0.0, 128
    %79 = vxpose.xlu0.b32.cont [6/16] 0.0, 128
    %80 = vxpose.xlu0.b32.cont [7/16] 0.0, 128
    %81 = vxpose.xlu0.b32.cont [8/16] 0.0, 128
    %82 = vxpose.xlu0.b32.cont [9/16] 0.0, 128
    %83 = vxpose.xlu0.b32.cont [10/16] 0.0, 128
    %84 = vxpose.xlu0.b32.cont [11/16] 0.0, 128
    %85 = vxpose.xlu0.b32.cont [12/16] 0.0, 128
    %86 = vxpose.xlu0.b32.cont [13/16] 0.0, 128
    %87 = vxpose.xlu0.b32.cont [14/16] 0.0, 128
    %88 = vxpose.xlu0.b32.cont [15/16] 0.0, 128
    %89 = vxpose.xlu0.b32.end [16/16] 0.0, 128
    %v90 = vpop.trf.xlu0
    %v91 = vpop.trf.xlu0
    %v92 = vpop.trf.xlu0
    %v93 = vpop.trf.xlu0
    %v94 = vpop.trf.xlu0
    %v95 = vpop.trf.xlu0
    %v96 = vpop.trf.xlu0
    %v97 = vpop.trf.xlu0
    %v98 = vpop.trf.xlu0
    %v99 = vpop.trf.xlu0
    %v100 = vpop.trf.xlu0
    %v101 = vpop.trf.xlu0
    %v102 = vpop.trf.xlu0
    %v103 = vpop.trf.xlu0
    %v104 = vpop.trf.xlu0
    %v105 = vpop.trf.xlu0
    %vm106 = vcmask 57344
    %107 = vst.msk [vmem:[#allocation8] sm:$0x1] %vm106, %v90
    // Predicated region
    $region22: #{tpu_custom_call.1} parent=1 // pred_check
      _
    $region23: #{tpu_custom_call.1} parent=1 // pred_check_branch
      %109 = sbr.rel (0) target = $region25
    $region24: #{tpu_custom_call.1} parent=1 // pred_region
      %s111 = ssub.s32 128, 128
      %112 = vsyncadd [#allocation4], %s111
      %s114 = sshll.u32 [#allocation7], 4
      %s115 = int_to_ptr.vmem [resolvable:$true] %s114
      %117 = dma.vmem_to_hbm [thread:$0]  %s115, 128, %s3, [#allocation4]
    $region25: #{tpu_custom_call.1} parent=1 // pred_fallthru
      _
    // Predicated region
    $region26: #{tpu_custom_call.1} parent=1 // pred_check
      _
    $region27: #{tpu_custom_call.1} parent=1 // pred_check_branch
      %119 = sbr.rel (0) target = $region29
    $region28: #{tpu_custom_call.1} parent=1 // pred_region
      %s121 = ssub.s32 16, 16
      %122 = vsyncadd [#allocation9], %s121
      %s124 = sshll.u32 [#allocation8], 4
      %s125 = int_to_ptr.vmem [resolvable:$true] %s124
      %127 = dma.vmem_to_hbm [thread:$0]  %s125, 16, %s4, [#allocation9]
    $region29: #{tpu_custom_call.1} parent=1 // pred_fallthru
      _
    // Predicated region
    $region30: #{tpu_custom_call.1} parent=1 // pred_check
      _
    $region31: #{tpu_custom_call.1} parent=1 // pred_check_branch
      %129 = sbr.rel (0) target = $region33
    $region32: #{tpu_custom_call.1} parent=1 // pred_region
      %130 = dma.done [#allocation4], 128
    $region33: #{tpu_custom_call.1} parent=1 // pred_fallthru
      _
    // Predicated region
    $region34: #{tpu_custom_call.1} parent=1 // pred_check
      _
    $region35: #{tpu_custom_call.1} parent=1 // pred_check_branch
      %132 = sbr.rel (0) target = $region37
    $region36: #{tpu_custom_call.1} parent=1 // pred_region
      %133 = dma.done [#allocation9], 16
    $region37: #{tpu_custom_call.1} parent=1 // pred_fallthru
      _
    %134 = vsyncpa [#allocation3], 1
    %135 = vsyncpa [#allocation4], 1
    %136 = vsyncpa [#allocation9], 1
    %137 = vsyncpa [#allocation5], 1

</llo_original>
